<compile_context>
chip_gen: v5e
topology: v5e:2x2
jax: 0.10.0
libtpu: 0.0.40
codegen_flags: <defaults>
</compile_context>

<pallas_src>
import functools
import math

import jax
import jax.numpy as jnp
import numpy as np
from jax.experimental import pallas as pl
from jax.experimental.pallas import tpu as pltpu


def _pick_tile(total, cap):
    """Largest multiple-of-16 divisor of `total` that is <= cap (else total)."""
    if total <= cap:
        return total
    best = total
    t = 16
    while t <= cap:
        if total % t == 0:
            best = t
        t += 16
    return best


# ---------------------------------------------------------------------------
# Kernel 1: pairwise squared distances  dist[i,j] = |vi|^2 + |vj|^2 - 2 vi.vj
# (row-tiled; q_j passed pre-oriented, q_i computed in-kernel — no eye/diag
#  extraction, no full-VxV XLU reductions)
# ---------------------------------------------------------------------------
def _dist_kernel(vi_ref, vall_ref, q_ref, o_ref):
    vi = vi_ref[0]                                                   # (TI, 3)
    va = vall_ref[0]                                                 # (V, 3)
    inner = jax.lax.dot_general(
        vi, va, (((1,), (1,)), ((), ())), preferred_element_type=jnp.float32
    )                                                                # (TI, V)
    q_i = jnp.sum(vi * vi, axis=1, keepdims=True)                    # (TI, 1)
    q_j = q_ref[0]                                                   # (1, V)
    o_ref[0] = q_i + q_j - 2.0 * inner


def pairwise_sq_dist(vertices):
    bs, V, _ = vertices.shape
    q = jnp.sum(vertices * vertices, axis=-1)[:, None, :]            # (bs,1,V)
    ti = _pick_tile(V, 512)
    return pl.pallas_call(
        _dist_kernel,
        out_shape=jax.ShapeDtypeStruct((bs, V, V), jnp.float32),
        grid=(bs, V // ti),
        in_specs=[
            pl.BlockSpec((1, ti, 3), lambda b, i: (b, i, 0)),        # row tile
            pl.BlockSpec((1, V, 3), lambda b, i: (b, 0, 0)),         # all verts
            pl.BlockSpec((1, 1, V), lambda b, i: (b, 0, 0)),         # q row
        ],
        out_specs=pl.BlockSpec((1, ti, V), lambda b, i: (b, i, 0)),
        compiler_params=pltpu.CompilerParams(
            dimension_semantics=("parallel", "parallel")),
    )(vertices, vertices, q)


# ---------------------------------------------------------------------------
# Kernel 2a: per-batch hoisted projections  vD = v @ D,  fsup = fmap @ W + b
# (computed once per batch, emitted in bf16 for the MXU gather)
# ---------------------------------------------------------------------------
def _proj_kernel(v_ref, f_ref, d_ref, w_ref, b_ref, vd_ref, fs_ref):
    vd = jnp.dot(v_ref[0], d_ref[...], preferred_element_type=jnp.float32)
    fs = jnp.dot(f_ref[0], w_ref[...], preferred_element_type=jnp.float32)
    fs = fs + b_ref[...]
    vd_ref[0] = vd.astype(vd_ref.dtype)
    fs_ref[0] = fs.astype(fs_ref.dtype)


def _project(vertices, feature_map, D, W_sup, b_sup, sc):
    bs, V, _ = vertices.shape
    cin = feature_map.shape[-1]
    return pl.pallas_call(
        _proj_kernel,
        out_shape=(jax.ShapeDtypeStruct((bs, V, sc), jnp.bfloat16),
                   jax.ShapeDtypeStruct((bs, V, sc), jnp.bfloat16)),
        grid=(bs,),
        in_specs=[
            pl.BlockSpec((1, V, 3), lambda b: (b, 0, 0)),
            pl.BlockSpec((1, V, cin), lambda b: (b, 0, 0)),
            pl.BlockSpec((3, sc), lambda b: (0, 0)),
            pl.BlockSpec((cin, sc), lambda b: (0, 0)),
            pl.BlockSpec((1, sc), lambda b: (0, 0)),
        ],
        out_specs=(pl.BlockSpec((1, V, sc), lambda b: (b, 0, 0)),
                   pl.BlockSpec((1, V, sc), lambda b: (b, 0, 0))),
        compiler_params=pltpu.CompilerParams(dimension_semantics=("parallel",)),
    )(vertices, feature_map, D, W_sup, b_sup)


# ---------------------------------------------------------------------------
# Kernel 2b: fused gather + modulate + support-mean, tiled over (batch, rows)
# ---------------------------------------------------------------------------
def _group_feature_kernel(sc, oh_ref, g_ref, vdr_ref, a_ref, out_ref):
    oh = oh_ref[0]                                                   # (TR, V)  bf16
    gathered = jnp.dot(oh, g_ref[0],
                       preferred_element_type=jnp.float32)           # (TR, 2*SC) f32
    vdr = vdr_ref[0].astype(jnp.float32)                             # (TR, SC)
    theta = jnp.maximum(gathered[:, :sc] - vdr, 0.0)                 # relu(disp @ D)
    act = theta * gathered[:, sc:]                                   # * gathered fsup
    out_ref[0] = jnp.dot(act, a_ref[...],
                         preferred_element_type=jnp.float32)         # mean over S


def gruop_feature_forward(vertices, feature_map, params, nsample, support_num,
                          out_channel):
    """Pallas implementation of GruopFeature.forward (neighbor_def='radius')."""
    bs, V, _ = vertices.shape
    N = nsample
    SC = support_num * out_channel

    # --- knn neighbor indices (distance kernel + top_k glue) ---
    dist = pairwise_sq_dist(vertices)
    _, idx = jax.lax.top_k(-dist, nsample + 1)      # smallest distances first
    idx = idx[:, :, 1:]                             # drop self, (bs, V, N)

    # --- hoisted per-batch projections (Pallas kernel 2a) ---
    W_sup = params["weights"][:, out_channel:]                       # (Cin, SC)
    b_sup = params["bias"][out_channel:].reshape(1, SC)              # (1, SC)
    D = params["displacement"]                                       # (3, SC)
    vd_bf, fsup_bf = _project(vertices, feature_map, D, W_sup, b_sup, SC)

    # --- glue: fused gather operand, bf16 one-hot, repeated center vD ---
    G = jnp.concatenate([vd_bf, fsup_bf], axis=-1)                   # (bs,V,2SC) bf16
    oh = jax.nn.one_hot(idx.reshape(bs, V * N), V, dtype=jnp.bfloat16)
    vdr = jnp.broadcast_to(vd_bf[:, :, None, :], (bs, V, N, SC))
    vdr = vdr.reshape(bs, V * N, SC)                                 # (bs,V*N,SC) bf16
    A = jnp.tile(jnp.eye(out_channel, dtype=jnp.float32),
                 (support_num, 1)) / float(support_num)              # (SC, Cout)

    tr = _pick_tile(V * N, 256)
    out_flat = pl.pallas_call(
        functools.partial(_group_feature_kernel, SC),
        out_shape=jax.ShapeDtypeStruct((bs, V * N, out_channel), jnp.float32),
        grid=(bs, (V * N) // tr),
        in_specs=[
            pl.BlockSpec((1, tr, V), lambda b, t: (b, t, 0)),        # one-hot tile
            pl.BlockSpec((1, V, 2 * SC), lambda b, t: (b, 0, 0)),    # [vD | fsup]
            pl.BlockSpec((1, tr, SC), lambda b, t: (b, t, 0)),       # center vD tile
            pl.BlockSpec((SC, out_channel), lambda b, t: (0, 0)),    # avg matrix
        ],
        out_specs=pl.BlockSpec((1, tr, out_channel), lambda b, t: (b, t, 0)),
        compiler_params=pltpu.CompilerParams(
            dimension_semantics=("parallel", "parallel")),
    )(oh, G, vdr, A)

    return out_flat.reshape(bs, V, N, out_channel), idx


# ---------------------------------------------------------------------------
# Pure-JAX f32 reference (mirrors the PyTorch code, given the same neighbors)
# ---------------------------------------------------------------------------
def reference_forward(vertices, feature_map, idx, params, support_num, out_channel):
    bs, V, _ = vertices.shape
    N = idx.shape[-1]
    b_ids = jnp.arange(bs)[:, None, None]
    nbrs = vertices[b_ids, idx]                             # (bs, V, N, 3)
    disp = nbrs - vertices[:, :, None, :]
    theta = jax.nn.relu(disp @ params["displacement"])      # (bs, V, N, S*Cout)
    fout = feature_map @ params["weights"] + params["bias"]
    fsup = fout[..., out_channel:]
    fsup_n = fsup[b_ids, idx]                               # (bs, V, N, S*Cout)
    act = theta * fsup_n
    act = act.reshape(bs, V, N, support_num, out_channel).mean(axis=3)
    return act


if __name__ == "__main__":
    bs, V, Cin, Cout, S, nsample = 2, 64, 32, 16, 4, 8

    key = jax.random.PRNGKey(0)
    k1, k2, k3, k4, k5 = jax.random.split(key, 5)
    vertices = jax.random.normal(k1, (bs, V, 3), dtype=jnp.float32)
    feature_map = jax.random.normal(k2, (bs, V, Cin), dtype=jnp.float32)

    # Deterministic parameter init matching GruopFeature.initialize()
    stdv = 1.0 / math.sqrt(Cout * (S + 1))
    params = {
        "weights": jax.random.uniform(k3, (Cin, (S + 1) * Cout), jnp.float32,
                                      -stdv, stdv),
        "bias": jax.random.uniform(k4, ((S + 1) * Cout,), jnp.float32,
                                   -stdv, stdv),
        "displacement": jax.random.uniform(k5, (3, S * Cout), jnp.float32,
                                           -stdv, stdv),
    }

    out, idx = gruop_feature_forward(vertices, feature_map, params,
                                     nsample, S, Cout)
    out = jax.block_until_ready(out)

    ref = reference_forward(vertices, feature_map, idx, params, S, Cout)
    np.testing.assert_allclose(np.asarray(out), np.asarray(ref),
                               rtol=2e-2, atol=2e-2)
    assert out.shape == (bs, V, nsample, Cout)
    print("KERNEL_OK")
</pallas_src>

<mosaic_0001>
module attributes {stable_mosaic.version = 11 : i64} {
  func.func @_dist_kernel(%arg0: i32, %arg1: i32, %arg2: memref<1x64x3xf32, #tpu.memory_space<vmem>>, %arg3: memref<1x64x3xf32, #tpu.memory_space<vmem>>, %arg4: memref<1x1x64xf32, #tpu.memory_space<vmem>>, %arg5: memref<1x64x64xf32, #tpu.memory_space<vmem>>) attributes {dimension_semantics = [#tpu.dimension_semantics<parallel>, #tpu.dimension_semantics<parallel>], iteration_bounds = array<i64: 2, 1>, scalar_prefetch = 0 : i64, scratch_operands = 0 : i64, tpu.core_type = #tpu.core_type<tc>, window_params = [{transform_indices = @transform_0, window_bounds = array<i64: 1, 64, 3>}, {transform_indices = @transform_1, window_bounds = array<i64: 1, 64, 3>}, {transform_indices = @transform_2, window_bounds = array<i64: 1, 1, 64>}, {transform_indices = @transform_3, window_bounds = array<i64: 1, 64, 64>}]} {
    %c0 = arith.constant 0 : index
    %c0_0 = arith.constant 0 : index
    %c0_1 = arith.constant 0 : index
    %0 = vector.load %arg2[%c0, %c0_0, %c0_1] : memref<1x64x3xf32, #tpu.memory_space<vmem>>, vector<1x64x3xf32>
    %1 = vector.shape_cast %0 : vector<1x64x3xf32> to vector<64x3xf32>
    %c0_2 = arith.constant 0 : index
    %c0_3 = arith.constant 0 : index
    %c0_4 = arith.constant 0 : index
    %2 = vector.load %arg3[%c0_2, %c0_3, %c0_4] : memref<1x64x3xf32, #tpu.memory_space<vmem>>, vector<1x64x3xf32>
    %3 = vector.shape_cast %2 : vector<1x64x3xf32> to vector<64x3xf32>
    %cst = arith.constant dense<0.000000e+00> : vector<64x64xf32>
    %4 = tpu.matmul %1, %3, %cst {dimension_numbers = #tpu.dot_dimension_numbers<[1], [1], [0], [0], [0, 0, 1, 0], [], []>} : vector<64x3xf32>, vector<64x3xf32>, vector<64x64xf32> -> vector<64x64xf32>
    %5 = arith.mulf %1, %1 : vector<64x3xf32>
    %cst_5 = arith.constant dense<0.000000e+00> : vector<64xf32>
    %6 = vector.multi_reduction <add>, %5, %cst_5 [1] : vector<64x3xf32> to vector<64xf32>
    %7 = vector.shape_cast %6 : vector<64xf32> to vector<64x1xf32>
    %c0_6 = arith.constant 0 : index
    %c0_7 = arith.constant 0 : index
    %c0_8 = arith.constant 0 : index
    %8 = vector.load %arg4[%c0_6, %c0_7, %c0_8] : memref<1x1x64xf32, #tpu.memory_space<vmem>>, vector<1x1x64xf32>
    %9 = vector.shape_cast %8 : vector<1x1x64xf32> to vector<1x64xf32>
    %10 = vector.broadcast %7 : vector<64x1xf32> to vector<64x64xf32>
    %11 = vector.broadcast %9 : vector<1x64xf32> to vector<64x64xf32>
    %12 = arith.addf %10, %11 : vector<64x64xf32>
    %cst_9 = arith.constant 2.000000e+00 : f32
    %13 = vector.broadcast %cst_9 : f32 to vector<64x64xf32>
    %14 = arith.mulf %13, %4 : vector<64x64xf32>
    %15 = arith.subf %12, %14 : vector<64x64xf32>
    %c0_10 = arith.constant 0 : index
    %c0_11 = arith.constant 0 : index
    %c0_12 = arith.constant 0 : index
    %16 = vector.load %arg5[%c0_10, %c0_11, %c0_12] : memref<1x64x64xf32, #tpu.memory_space<vmem>>, vector<1x64x64xf32>
    %17 = vector.shape_cast %16 : vector<1x64x64xf32> to vector<64x64xf32>
    %18 = vector.shape_cast %15 : vector<64x64xf32> to vector<1x64x64xf32>
    tpu.vector_store %arg5[%c0_10, %c0_11, %c0_12], %18 {strides = array<i32>} : memref<1x64x64xf32, #tpu.memory_space<vmem>>, vector<1x64x64xf32>,
    return
  }
  func.func @transform_0(%arg0: i32, %arg1: i32) -> (i32, i32, i32) {
    %c0_i32 = arith.constant 0 : i32
    %c0_i32_0 = arith.constant 0 : i32
    return %arg0, %arg1, %c0_i32 : i32, i32, i32
  }
  func.func @transform_1(%arg0: i32, %arg1: i32) -> (i32, i32, i32) {
    %c0_i32 = arith.constant 0 : i32
    %c0_i32_0 = arith.constant 0 : i32
    %c0_i32_1 = arith.constant 0 : i32
    return %arg0, %c0_i32, %c0_i32_0 : i32, i32, i32
  }
  func.func @transform_2(%arg0: i32, %arg1: i32) -> (i32, i32, i32) {
    %c0_i32 = arith.constant 0 : i32
    %c0_i32_0 = arith.constant 0 : i32
    %c0_i32_1 = arith.constant 0 : i32
    return %arg0, %c0_i32, %c0_i32_0 : i32, i32, i32
  }
  func.func @transform_3(%arg0: i32, %arg1: i32) -> (i32, i32, i32) {
    %c0_i32 = arith.constant 0 : i32
    %c0_i32_0 = arith.constant 0 : i32
    return %arg0, %arg1, %c0_i32 : i32, i32, i32
  }
}

</mosaic_0001>

<llo_original>
// kernel: tpu_custom_call.1
$region0: #{tpu_custom_call.1}
  #allocation0 [shape = 'u32[]', space=smem, size = 0x4, offset = 0x4, fixed_abs, tag = 'smem constant byte address 0x4 - core index']
  #allocation1 [shape = 'u32[72,128]{1,0:T(1,128)}', space=vmem, size = 0x9000, scoped, tag = 'internal scratch']
  %s0 = inlined_call_operand.vmem [shape: f32[2,64,3], index: 0, kind: input, shape index: {}]
  %s1 = inlined_call_operand.vmem [shape: f32[2,64,3], index: 1, kind: input, shape index: {}]
  %s2 = inlined_call_operand.vmem [shape: f32[2,1,64], index: 2, kind: input, shape index: {}]
  %s3 = inlined_call_operand.hbm [shape: f32[2,64,64], index: 3, kind: output, shape index: {}]
  %s4 = sld [smem:[#allocation0]]
  $region45: #{tpu_custom_call.1} parent=0
    _
  %s6 = ssub.s32 1, %s4
  %s7 = scalar_select 0, %s6, %s4
  $region1: #{tpu_custom_call.1} parent=0
    #allocation2 [shape = 'u8[65536]{0}', space=vmem, size = 0x10000, scoped, tag = 'output window, operand 0']
    #allocation3 [shape = 's32[2]{0}', space=sflag, size = 0x8, scoped, tag = 'scoped memory for tpu_custom_call.1']
    %8 = vsyncpa [#allocation3], 0
    %s9 = scalar_lea.sflag [#allocation3], 1
    %10 = vsyncpa %s9, 0
    loop: start=0, step=1, limit=4
    $region2: #{tpu_custom_call.1} parent=1 // loop_pre_header
      _
    $region3: #{tpu_custom_call.1} parent=1 // loop_header
      %s12 = sphi 0, %s16
      %p13 = scmp.ge.s32.totalorder %s12, 4
      %s19 = sphi 0, %s31
      %s20 = sphi 0, %s27
      %s21 = sphi 0, %s19
      %s22 = sphi 0, %s20
      %s23 = sphi 0, %s21
      %s24 = sphi 0, %s22
      %s36 = sphi 0, %s38
      %s39 = sphi 0, %s36
      %s40 = sphi 0, %s39
      %s56 = sphi 0, %s40
      %s62 = sphi 0, %s64
      %s65 = sphi 0, %s62
      %s66 = sphi 0, %s65
      %s82 = sphi 0, %s66
      %s88 = sphi 0, %s90
      %s91 = sphi 0, %s88
      %s92 = sphi 0, %s91
      %s108 = sphi 0, %s92
      %s116 = sphi 0, %s118
      %s119 = sphi 0, %s116
      %s120 = sphi 0, %s119
      %s136 = sphi 0, %s120
    $region4: #{tpu_custom_call.1} parent=1 // loop_header_branch
      %15 = sbr.rel (%p13) target = $region8
    $region5: #{tpu_custom_call.1} parent=1 // loop_body
      %s17 = ssub.s32 %s12, 1
      %s18 = ssub.s32 %s12, 2
      %s25 = sadd.s32 1, %s20
      %p26 = scmp.ge.s32.totalorder %s25, 1
      %s27 = scalar_select %p26, 0, %s25
      %s28 = sadd.s32 1, %s19
      %s29 = scalar_select %p26, %s28, %s19
      %p30 = scmp.ge.s32.totalorder %s29, 2
      %s31 = scalar_select %p30, 0, %s29
      %s32 = ssub.s32 %s19, %s31
      %s33 = ssub.s32 %s20, %s27
      %s34 = sor.u32 %s32, %s33
      %p35 = scmp.eq.s32.totalorder %s34, 0
      %s37 = sadd.s32 %s36, 1
      %s38 = scalar_select %p35, %s36, %s37
      %p41 = pneg %p35
      %p42 = scmp.eq.s32.totalorder %s12, 1
      %p43 = por %p41, %p42
      %p44 = scmp.ne.s32.totalorder %s36, %s39
      %p45 = scmp.eq.s32.totalorder %s12, 0
      %p46 = por %p44, %p45
      %p47 = scmp.ne.s32.totalorder %s36, %s39
      %p48 = scmp.eq.s32.totalorder %s17, 1
      %p49 = por %p47, %p48
      %p50 = scmp.ne.s32.totalorder %s39, %s40
      %p51 = scmp.eq.s32.totalorder %s17, 0
      %p52 = por %p50, %p51
      %p53 = scmp.ne.s32.totalorder %s39, %s40
      %p54 = scmp.eq.s32.totalorder %s18, 1
      %p55 = por %p53, %p54
      %p57 = scmp.ne.s32.totalorder %s40, %s56
      %p58 = scmp.eq.s32.totalorder %s18, 0
      %p59 = por %p57, %p58
      %s60 = ssub.s32 %s19, %s31
      %p61 = scmp.eq.s32.totalorder %s60, 0
      %s63 = sadd.s32 %s62, 1
      %s64 = scalar_select %p61, %s62, %s63
      %p67 = pneg %p61
      %p68 = scmp.eq.s32.totalorder %s12, 1
      %p69 = por %p67, %p68
      %p70 = scmp.ne.s32.totalorder %s62, %s65
      %p71 = scmp.eq.s32.totalorder %s12, 0
      %p72 = por %p70, %p71
      %p73 = scmp.ne.s32.totalorder %s62, %s65
      %p74 = scmp.eq.s32.totalorder %s17, 1
      %p75 = por %p73, %p74
      %p76 = scmp.ne.s32.totalorder %s65, %s66
      %p77 = scmp.eq.s32.totalorder %s17, 0
      %p78 = por %p76, %p77
      %p79 = scmp.ne.s32.totalorder %s65, %s66
      %p80 = scmp.eq.s32.totalorder %s18, 1
      %p81 = por %p79, %p80
      %p83 = scmp.ne.s32.totalorder %s66, %s82
      %p84 = scmp.eq.s32.totalorder %s18, 0
      %p85 = por %p83, %p84
      %s86 = ssub.s32 %s19, %s31
      %p87 = scmp.eq.s32.totalorder %s86, 0
      %s89 = sadd.s32 %s88, 1
      %s90 = scalar_select %p87, %s88, %s89
      %p93 = pneg %p87
      %p94 = scmp.eq.s32.totalorder %s12, 1
      %p95 = por %p93, %p94
      %p96 = scmp.ne.s32.totalorder %s88, %s91
      %p97 = scmp.eq.s32.totalorder %s12, 0
      %p98 = por %p96, %p97
      %p99 = scmp.ne.s32.totalorder %s88, %s91
      %p100 = scmp.eq.s32.totalorder %s17, 1
      %p101 = por %p99, %p100
      %p102 = scmp.ne.s32.totalorder %s91, %s92
      %p103 = scmp.eq.s32.totalorder %s17, 0
      %p104 = por %p102, %p103
      %p105 = scmp.ne.s32.totalorder %s91, %s92
      %p106 = scmp.eq.s32.totalorder %s18, 1
      %p107 = por %p105, %p106
      %p109 = scmp.ne.s32.totalorder %s92, %s108
      %p110 = scmp.eq.s32.totalorder %s18, 0
      %p111 = por %p109, %p110
      %s112 = ssub.s32 %s19, %s31
      %s113 = ssub.s32 %s20, %s27
      %s114 = sor.u32 %s112, %s113
      %p115 = scmp.eq.s32.totalorder %s114, 0
      %s117 = sadd.s32 %s116, 1
      %s118 = scalar_select %p115, %s116, %s117
      %p121 = pneg %p115
      %p122 = scmp.eq.s32.totalorder %s12, 1
      %p123 = por %p121, %p122
      %p124 = scmp.ne.s32.totalorder %s116, %s119
      %p125 = scmp.eq.s32.totalorder %s12, 0
      %p126 = por %p124, %p125
      %p127 = scmp.ne.s32.totalorder %s116, %s119
      %p128 = scmp.eq.s32.totalorder %s17, 1
      %p129 = por %p127, %p128
      %p130 = scmp.ne.s32.totalorder %s119, %s120
      %p131 = scmp.eq.s32.totalorder %s17, 0
      %p132 = por %p130, %p131
      %p133 = scmp.ne.s32.totalorder %s119, %s120
      %p134 = scmp.eq.s32.totalorder %s18, 1
      %p135 = por %p133, %p134
      %p137 = scmp.ne.s32.totalorder %s120, %s136
      %p138 = scmp.eq.s32.totalorder %s18, 0
      %p139 = por %p137, %p138
      %p140 = scmp.le.s32.totalorder 1, %s12
      %p141 = scmp.lt.s32.totalorder %s12, 3
      %p142 = pnand %p140, %p141
      %p143 = pneg %p142
      // Predicated region
      $region9: #{tpu_custom_call.1} parent=5 // pred_check
        _
      $region10: #{tpu_custom_call.1} parent=5 // pred_check_branch
        %145 = sbr.rel (%p142) target = $region12
      $region11: #{tpu_custom_call.1} parent=5 // pred_region
        %s146 = ssub.s32 %s12, 1
      $region12: #{tpu_custom_call.1} parent=5 // pred_fallthru
        _
      %p147 = scmp.lt.s32.totalorder %s12, 2
      // Predicated region
      $region13: #{tpu_custom_call.1} parent=5 // pred_check
        %p148 = pneg %p147
      $region14: #{tpu_custom_call.1} parent=5 // pred_check_branch
        %150 = sbr.rel (%p148) target = $region16
      $region15: #{tpu_custom_call.1} parent=5 // pred_region
        // Predicated region
        $region17: #{tpu_custom_call.1} parent=15 // pred_check
          %p151 = pneg %p46
        $region18: #{tpu_custom_call.1} parent=15 // pred_check_branch
          %153 = sbr.rel (%p151) target = $region20
        $region19: #{tpu_custom_call.1} parent=15 // pred_region
          %s154 = smul.u32 8, %s20
          %p155 = scmp.lt.s32.totalorder %s19, 1
          %s156 = scalar_select %p155, %s19, 1
          %p157 = scmp.lt.s32.totalorder %s154, 7
          %s158 = scalar_select %p157, %s154, 7
          %s159 = smul.addr %s156, 8
          %s160 = sadd.s32 %s158, %s159
          %s161 = smul.addr %s160, 8
          %s162 = scalar_lea.vmem %s0, %s161
          %s163 = smul.u32 8, %s20
        $region20: #{tpu_custom_call.1} parent=15 // pred_fallthru
          _
        // Predicated region
        $region21: #{tpu_custom_call.1} parent=15 // pred_check
          %p164 = pneg %p72
        $region22: #{tpu_custom_call.1} parent=15 // pred_check_branch
          %166 = sbr.rel (%p164) target = $region24
        $region23: #{tpu_custom_call.1} parent=15 // pred_region
          %p167 = scmp.lt.s32.totalorder %s19, 1
          %s168 = scalar_select %p167, %s19, 1
          %s169 = smul.addr %s168, 8
          %s170 = smul.addr %s169, 8
          %s171 = scalar_lea.vmem %s1, %s170
        $region24: #{tpu_custom_call.1} parent=15 // pred_fallthru
          _
        // Predicated region
        $region25: #{tpu_custom_call.1} parent=15 // pred_check
          %p172 = pneg %p98
        $region26: #{tpu_custom_call.1} parent=15 // pred_check_branch
          %174 = sbr.rel (%p172) target = $region28
        $region27: #{tpu_custom_call.1} parent=15 // pred_region
          %p175 = scmp.lt.s32.totalorder %s19, 1
          %s176 = scalar_select %p175, %s19, 1
          %s177 = scalar_lea.vmem %s2, %s176
        $region28: #{tpu_custom_call.1} parent=15 // pred_fallthru
          _
      $region16: #{tpu_custom_call.1} parent=5 // pred_fallthru
        _
      %p178 = scmp.le.s32.totalorder 1, %s12
      %p179 = scmp.lt.s32.totalorder %s12, 3
      %p180 = pnand %p178, %p179
      %p181 = pneg %p180
      // Predicated region
      $region29: #{tpu_custom_call.1} parent=5 // pred_check
        _
      $region30: #{tpu_custom_call.1} parent=5 // pred_check_branch
        %183 = sbr.rel (%p180) target = $region32
      $region31: #{tpu_custom_call.1} parent=5 // pred_region
        %s184 = ssub.s32 %s12, 1
        %s185 = smul.u32 8, %s22
        %p186 = scmp.lt.s32.totalorder %s21, 1
        %s187 = scalar_select %p186, %s21, 1
        %p188 = scmp.lt.s32.totalorder %s185, 7
        %s189 = scalar_select %p188, %s185, 7
        %s190 = smul.addr %s187, 8
        %s191 = sadd.s32 %s189, %s190
        %s192 = smul.addr %s191, 8
        %s193 = scalar_lea.vmem %s0, %s192
        %p194 = pneg %p52
        %p195 = pneg %p49
        %p196 = scmp.lt.s32.totalorder %s21, 1
        %s197 = scalar_select %p196, %s21, 1
        %s198 = smul.addr %s197, 8
        %s199 = smul.addr %s198, 8
        %s200 = scalar_lea.vmem %s1, %s199
        %p201 = pneg %p78
        %p202 = pneg %p75
        %p203 = scmp.lt.s32.totalorder %s21, 1
        %s204 = scalar_select %p203, %s21, 1
        %s205 = scalar_lea.vmem %s2, %s204
        %p206 = pneg %p104
        %p207 = pneg %p101
        %p208 = pneg %p132
        %p209 = pneg %p129
        %s210 = sand.u32 %s119, 1
        %s211 = scalar_lea.sflag [#allocation3], %s210
        %s212 = sand.u32 %s119, 1
        %s213 = smul.addr %s212, 64
        %s214 = scalar_lea.vmem [#allocation2], %s213
        %s215 = smul.u32 8, %s22
        %p216 = scmp.lt.s32.totalorder %s21, 1
        %s217 = scalar_select %p216, %s21, 1
        %p218 = scmp.lt.s32.totalorder %s215, 7
        %s219 = scalar_select %p218, %s215, 7
        %s220 = smul.addr %s217, 8
        %s221 = sadd.s32 %s219, %s220
        %s222 = smul.addr %s221, 8
        %s223 = scalar_lea.vmem %s0, %s222
        %s224 = smul.u32 8, %s22
        %p225 = scmp.lt.s32.totalorder %s21, 1
        %s226 = scalar_select %p225, %s21, 1
        %s227 = smul.addr %s226, 8
        %s228 = smul.addr %s227, 8
        %s229 = scalar_lea.vmem %s1, %s228
        %p230 = scmp.lt.s32.totalorder %s21, 1
        %s231 = scalar_select %p230, %s21, 1
        %s232 = scalar_lea.vmem %s2, %s231
        %s233 = smul.u32 8, %s22
        %v234 = vld [vmem:[%s223] sm:$0xff]
        %v235 = vld [vmem:[%s223 + $0x8] sm:$0xff]
        %v236 = vld [vmem:[%s223 + $0x10] sm:$0xff]
        %v237 = vld [vmem:[%s223 + $0x18] sm:$0xff]
        %v238 = vld [vmem:[%s223 + $0x20] sm:$0xff]
        %v239 = vld [vmem:[%s223 + $0x28] sm:$0xff]
        %v240 = vld [vmem:[%s223 + $0x30] sm:$0xff]
        %v241 = vld [vmem:[%s223 + $0x38] sm:$0xff]
        %v242 = vld [vmem:[%s229] sm:$0xff]
        %v243 = vld [vmem:[%s229 + $0x8] sm:$0xff]
        %v244 = vld [vmem:[%s229 + $0x10] sm:$0xff]
        %v245 = vld [vmem:[%s229 + $0x18] sm:$0xff]
        %v246 = vld [vmem:[%s229 + $0x20] sm:$0xff]
        %v247 = vld [vmem:[%s229 + $0x28] sm:$0xff]
        %v248 = vld [vmem:[%s229 + $0x30] sm:$0xff]
        %v249 = vld [vmem:[%s229 + $0x38] sm:$0xff]
        %vm250 = vcmask 23552
        %v252 = vsel %vm250, %v234, 0
        %v255 = vsel %vm250, %v235, 0
        %v258 = vsel %vm250, %v236, 0
        %v261 = vsel %vm250, %v237, 0
        %v264 = vsel %vm250, %v238, 0
        %v267 = vsel %vm250, %v239, 0
        %v270 = vsel %vm250, %v240, 0
        %v273 = vsel %vm250, %v241, 0
        %v276 = vsel %vm250, %v242, 0
        %v279 = vsel %vm250, %v243, 0
        %v282 = vsel %vm250, %v244, 0
        %v285 = vsel %vm250, %v245, 0
        %v288 = vsel %vm250, %v246, 0
        %v291 = vsel %vm250, %v247, 0
        %v294 = vsel %vm250, %v248, 0
        %v297 = vsel %vm250, %v249, 0
        %299 = vmatpush.xpose.msra.mxu0 0.0
        %300 = vmatpush.xpose.msra.mxu0 0.0
        %301 = vmatpush.xpose.msra.mxu0 0.0
        %302 = vmatpush.xpose.msra.mxu0 0.0
        %303 = vmatpush.xpose.msra.mxu0 0.0
        %304 = vmatpush.xpose.msra.mxu0 0.0
        %305 = vmatpush.xpose.msra.mxu0 0.0
        %306 = vmatpush.xpose.msra.mxu0 0.0
        %307 = vmatpush.xpose.msra.mxu0 %v297
        %308 = vmatpush.xpose.msra.mxu0 %v294
        %309 = vmatpush.xpose.msra.mxu0 %v291
        %310 = vmatpush.xpose.msra.mxu0 %v288
        %311 = vmatpush.xpose.msra.mxu0 %v285
        %312 = vmatpush.xpose.msra.mxu0 %v282
        %313 = vmatpush.xpose.msra.mxu0 %v279
        %314 = vmatpush.xpose.msra.mxu0 %v276
        %315 = vmatmul.f32.gmra.mxu0 %v252
        %v316 = vpop.f32.mrf.mxu0
        %v317 = vadd.f32 0.0, %v316
        %318 = vmatmul.f32.gmra.mxu0 %v255
        %v319 = vpop.f32.mrf.mxu0
        %v320 = vadd.f32 0.0, %v319
        %321 = vmatmul.f32.gmra.mxu0 %v258
        %v322 = vpop.f32.mrf.mxu0
        %v323 = vadd.f32 0.0, %v322
        %324 = vmatmul.f32.gmra.mxu0 %v261
        %v325 = vpop.f32.mrf.mxu0
        %v326 = vadd.f32 0.0, %v325
        %327 = vmatmul.f32.gmra.mxu0 %v264
        %v328 = vpop.f32.mrf.mxu0
        %v329 = vadd.f32 0.0, %v328
        %330 = vmatmul.f32.gmra.mxu0 %v267
        %v331 = vpop.f32.mrf.mxu0
        %v332 = vadd.f32 0.0, %v331
        %333 = vmatmul.f32.gmra.mxu0 %v270
        %v334 = vpop.f32.mrf.mxu0
        %v335 = vadd.f32 0.0, %v334
        %336 = vmatmul.f32.gmra.mxu0 %v273
        %v337 = vpop.f32.mrf.mxu0
        %v338 = vadd.f32 0.0, %v337
        %339 = vdwg.mxu0
        %v340 = vmul.f32 %v234, %v234
        %v341 = vmul.f32 %v235, %v235
        %v342 = vmul.f32 %v236, %v236
        %v343 = vmul.f32 %v237, %v237
        %v344 = vmul.f32 %v238, %v238
        %v345 = vmul.f32 %v239, %v239
        %v346 = vmul.f32 %v240, %v240
        %v347 = vmul.f32 %v241, %v241
        %v348 = vsel %vm250, %v340, 0.0
        %349 = vadd.xlane.f32.xlu0 %v348
        %v350 = vpop.xlane.xlu0 %349
        %v351 = vsel %vm250, %v341, 0.0
        %352 = vadd.xlane.f32.xlu0 %v351
        %v353 = vpop.xlane.xlu0 %352
        %v354 = vsel %vm250, %v342, 0.0
        %355 = vadd.xlane.f32.xlu0 %v354
        %v356 = vpop.xlane.xlu0 %355
        %v357 = vsel %vm250, %v343, 0.0
        %358 = vadd.xlane.f32.xlu0 %v357
        %v359 = vpop.xlane.xlu0 %358
        %v360 = vsel %vm250, %v344, 0.0
        %361 = vadd.xlane.f32.xlu0 %v360
        %v362 = vpop.xlane.xlu0 %361
        %v363 = vsel %vm250, %v345, 0.0
        %364 = vadd.xlane.f32.xlu0 %v363
        %v365 = vpop.xlane.xlu0 %364
        %v366 = vsel %vm250, %v346, 0.0
        %367 = vadd.xlane.f32.xlu0 %v366
        %v368 = vpop.xlane.xlu0 %367
        %v369 = vsel %vm250, %v347, 0.0
        %370 = vadd.xlane.f32.xlu0 %v369
        %v371 = vpop.xlane.xlu0 %370
        %v372 = vld [vmem:[%s232] sm:$0x1]
        %v374 = vperm.slane %v372, 0
        %v376 = vadd.f32 %v350, %v374
        %v377 = vadd.f32 %v353, %v374
        %v378 = vadd.f32 %v356, %v374
        %v379 = vadd.f32 %v359, %v374
        %v380 = vadd.f32 %v362, %v374
        %v381 = vadd.f32 %v365, %v374
        %v382 = vadd.f32 %v368, %v374
        %v383 = vadd.f32 %v371, %v374
        %v384 = vmul.f32 %v317, 2.0
        %v385 = vmul.f32 %v320, 2.0
        %v386 = vmul.f32 %v323, 2.0
        %v387 = vmul.f32 %v326, 2.0
        %v388 = vmul.f32 %v329, 2.0
        %v389 = vmul.f32 %v332, 2.0
        %v390 = vmul.f32 %v335, 2.0
        %v391 = vmul.f32 %v338, 2.0
        %v392 = vsub.f32 %v376, %v384
        %v393 = vsub.f32 %v377, %v385
        %v394 = vsub.f32 %v378, %v386
        %v395 = vsub.f32 %v379, %v387
        %v396 = vsub.f32 %v380, %v388
        %v397 = vsub.f32 %v381, %v389
        %v398 = vsub.f32 %v382, %v390
        %v399 = vsub.f32 %v383, %v391
        %vm400 = vcmask 523264
        %401 = vst.msk [vmem:[%s214] sm:$0xff] %vm400, %v392
        %402 = vst.msk [vmem:[%s214 + $0x8] sm:$0xff] %vm400, %v393
        %403 = vst.msk [vmem:[%s214 + $0x10] sm:$0xff] %vm400, %v394
        %404 = vst.msk [vmem:[%s214 + $0x18] sm:$0xff] %vm400, %v395
        %405 = vst.msk [vmem:[%s214 + $0x20] sm:$0xff] %vm400, %v396
        %406 = vst.msk [vmem:[%s214 + $0x28] sm:$0xff] %vm400, %v397
        %407 = vst.msk [vmem:[%s214 + $0x30] sm:$0xff] %vm400, %v398
        %408 = vst.msk [vmem:[%s214 + $0x38] sm:$0xff] %vm400, %v399
        %s409 = sand.u32 %s119, 1
        %s410 = scalar_lea.sflag [#allocation3], %s409
        %s411 = sand.u32 %s119, 1
        %s412 = smul.addr %s411, 64
        %s413 = scalar_lea.vmem [#allocation2], %s412
        // Predicated region
        $region33: #{tpu_custom_call.1} parent=31 // pred_check
          %p414 = pneg %p129
        $region34: #{tpu_custom_call.1} parent=31 // pred_check_branch
          %416 = sbr.rel (%p414) target = $region36
        $region35: #{tpu_custom_call.1} parent=31 // pred_region
          %s417 = smul.u32 8, %s22
          %419 = vsyncadd %s410, 0
          %s420 = smul.addr %s21, 8
          %s421 = sadd.s32 %s417, %s420
          %s422 = smul.addr %s421, 8
          %s423 = scalar_lea.hbm %s3, %s422
          %s424 = sshll.u32 %s413, 4
          %s425 = int_to_ptr.vmem [resolvable:$true] %s424
          %s426 = sshll.u32 %s423, 4
          %s427 = int_to_ptr.hbm [resolvable:$true] %s426
          %432 = dma.vmem_to_hbm [thread:$0]  %s425, 1024, %s427, %s410, 128, 128, 8
        $region36: #{tpu_custom_call.1} parent=31 // pred_fallthru
          _
      $region32: #{tpu_custom_call.1} parent=5 // pred_fallthru
        _
      %p433 = scmp.le.s32.totalorder 2, %s12
      // Predicated region
      $region37: #{tpu_custom_call.1} parent=5 // pred_check
        %p434 = pneg %p433
      $region38: #{tpu_custom_call.1} parent=5 // pred_check_branch
        %436 = sbr.rel (%p434) target = $region40
      $region39: #{tpu_custom_call.1} parent=5 // pred_region
        %s437 = ssub.s32 %s12, 2
        // Predicated region
        $region41: #{tpu_custom_call.1} parent=39 // pred_check
          %p438 = pneg %p135
        $region42: #{tpu_custom_call.1} parent=39 // pred_check_branch
          %440 = sbr.rel (%p438) target = $region44
        $region43: #{tpu_custom_call.1} parent=39 // pred_region
          %s441 = sand.u32 %s120, 1
          %s442 = scalar_lea.sflag [#allocation3], %s441
          %s443 = sand.u32 %s120, 1
          %s444 = smul.addr %s443, 64
          %s445 = scalar_lea.vmem [#allocation2], %s444
          %447 = dma.done %s442, 1024
        $region44: #{tpu_custom_call.1} parent=39 // pred_fallthru
          _
      $region40: #{tpu_custom_call.1} parent=5 // pred_fallthru
        _
    $region6: #{tpu_custom_call.1} parent=1 // loop_footer
      %s16 = sadd.s32 1, %s12
    $region7: #{tpu_custom_call.1} parent=1 // loop_footer_branch
      %11 = sbr.rel target = $region3
    $region8: #{tpu_custom_call.1} parent=1 // loop_exit
      _
    %448 = vsyncpa [#allocation3], 1
    %s449 = scalar_lea.sflag [#allocation3], 1
    %450 = vsyncpa %s449, 1

</llo_original>
